<compile_context>
chip_gen: v7x
topology: tpu7x:2x2x1
jax: 0.10.0
libtpu: 0.0.40
codegen_flags: <defaults>
</compile_context>

<pallas_src>
import functools

import jax
import jax.numpy as jnp
from jax.experimental import pallas as pl
from jax.experimental.pallas import tpu as pltpu


def _round_up(n: int, m: int) -> int:
    return ((n + m - 1) // m) * m


def _sublane_multiple(dtype) -> int:
    """Rows per vreg sublane group: 8 for f32, 16 for bf16, 32 for int8/fp8."""
    return max(8, 32 // jnp.dtype(dtype).itemsize)


def _adapter_kernel(x_ref, w1_ref, b1_ref, g1_ref, w2_ref, b2_ref, g2_ref, o_ref,
                    *, add_residual: bool, matmul_dtype):
    x = x_ref[...]                                   # (tm, H), streamed in x's original dtype
    # Operand cast happens per-tile in VMEM (no extra HBM pass in the wrapper).
    xc = x.astype(matmul_dtype)
    # fc1 -> ReLU -> gate (bottleneck down-projection), f32 accumulation on the MXU.
    h = jnp.dot(xc, w1_ref[...], preferred_element_type=jnp.float32)     # (tm, A_pad) f32
    h = jnp.maximum(h + b1_ref[...], 0.0) * g1_ref[...]
    # fc2 -> ReLU -> gate (up-projection).
    y = jnp.dot(h.astype(matmul_dtype), w2_ref[...],
                preferred_element_type=jnp.float32)                       # (tm, H) f32
    y = jnp.maximum(y + b2_ref[...], 0.0) * g2_ref[...]
    if add_residual:
        y = y + x.astype(jnp.float32)                # residual added in f32 from original x
    o_ref[...] = y.astype(o_ref.dtype)


def roberta_adapter(x, w1, b1, w2, b2, gfc1=None, gfc2=None, *,
                    add_residual=True, row_tile=None, matmul_dtype=jnp.bfloat16,
                    donate_x=False, io_vmem_budget_bytes=12 * 1024 * 1024,
                    max_row_tile=1024):
    """Fused bottleneck adapter (RobertaAdapter / RobertaAdapterMask.get_feature).

    x: (..., hidden); w1: (hidden, adapter); b1: (adapter,); w2: (adapter, hidden);
    b2: (hidden,); gfc1/gfc2: optional task-mask gates (adapter,) / (hidden,).
    Returns relu(relu(x@w1+b1)*g1 @ w2 + b2)*g2 (+ x if add_residual), dtype = x.dtype.
    `matmul_dtype` only affects the two matmul operands; accumulation and the elementwise
    chain (bias, ReLU, gate, residual) are f32.
    """
    orig_shape = x.shape
    hidden = orig_shape[-1]
    adapter = w1.shape[1]
    assert w1.shape == (hidden, adapter) and w2.shape == (adapter, hidden)

    out_dtype = jnp.dtype(x.dtype)
    mm_dtype = jnp.dtype(matmul_dtype)

    x2 = x.reshape(-1, hidden)                      # NO dtype cast here: stream original bytes
    rows = x2.shape[0]

    # ---- lane-density: zero-pad the adapter (bottleneck) axis to a multiple of 128.      ----
    # Keep it at 128 even on the 256-wide MXUs (v6e/v7x): HBM-bound, extra padding = waste.
    a_pad = adapter if adapter % 128 == 0 else _round_up(adapter, 128)
    w1p = w1.astype(mm_dtype)
    w2p = w2.astype(mm_dtype)
    b1p = jnp.asarray(b1, jnp.float32).reshape(1, adapter)
    g1p = (jnp.ones((1, adapter), jnp.float32) if gfc1 is None
           else jnp.asarray(gfc1, jnp.float32).reshape(1, adapter))
    if a_pad != adapter:
        pad = a_pad - adapter
        w1p = jnp.pad(w1p, ((0, 0), (0, pad)))      # extra columns -> zeros
        w2p = jnp.pad(w2p, ((0, pad), (0, 0)))      # extra rows    -> zeros
        b1p = jnp.pad(b1p, ((0, 0), (0, pad)))
        g1p = jnp.pad(g1p, ((0, 0), (0, pad)))
    b2p = jnp.asarray(b2, jnp.float32).reshape(1, hidden)
    g2p = (jnp.ones((1, hidden), jnp.float32) if gfc2 is None
           else jnp.asarray(gfc2, jnp.float32).reshape(1, hidden))

    # ---- row-tile selection: stream rows, keep double-buffered I/O inside a VMEM budget ----
    x_isz = out_dtype.itemsize                       # x and out share a dtype
    out_isz = out_dtype.itemsize
    sublane = _sublane_multiple(out_dtype)           # 8 (f32) / 16 (bf16) / 32 (int8)
    if row_tile is None:
        bytes_per_row = 2 * hidden * (x_isz + out_isz)        # double-buffered x + out tiles
        cap = max(sublane, io_vmem_budget_bytes // max(1, bytes_per_row))
        row_tile = min(rows, max_row_tile, cap)
    if row_tile >= rows:
        row_tile = rows                                        # single full block (small inputs)
    else:
        row_tile = max(sublane, (row_tile // sublane) * sublane)   # dtype sublane multiple

    # v7x megacore: make sure the "parallel" row axis has enough steps for 2 TensorCores.
    min_grid_steps = 4
    if rows > min_grid_steps * sublane:
        while row_tile > sublane and pl.cdiv(rows, row_tile) < min_grid_steps:
            row_tile = max(sublane, ((row_tile // 2) // sublane) * sublane)

    grid = (pl.cdiv(rows, row_tile),)

    # ---- VMEM limit: sized from the chosen tile, capped at 48 MiB (< v7x's 64 MiB TC) ----
    mm_isz = mm_dtype.itemsize
    io_bytes = 2 * row_tile * hidden * (x_isz + out_isz)               # double-buffered x/out
    w_bytes = 2 * (2 * hidden * a_pad) * mm_isz + 2 * (2 * a_pad + 2 * hidden) * 4
    scratch_bytes = row_tile * (a_pad + hidden) * 4                     # f32 intermediates
    vmem_limit = int(min(max(1.25 * (io_bytes + w_bytes + scratch_bytes) + (2 << 20),
                             16 << 20), 48 << 20))

    flops = 4 * rows * hidden * a_pad                                   # two matmuls
    bytes_accessed = (rows * hidden * (x_isz + out_isz)
                      + 2 * hidden * a_pad * mm_isz
                      + (2 * a_pad + 2 * hidden) * 4)
    cost = pl.CostEstimate(flops=int(flops), transcendentals=0,
                           bytes_accessed=int(bytes_accessed))

    # Alias x -> out only when the caller genuinely donates x; otherwise XLA would insert a
    # defensive full copy (an extra HBM pass on a mem-bound kernel).
    io_aliases = {0: 0} if (donate_x and x2.dtype == out_dtype) else {}

    kernel = functools.partial(_adapter_kernel, add_residual=bool(add_residual),
                               matmul_dtype=mm_dtype)
    out = pl.pallas_call(
        kernel,
        out_shape=jax.ShapeDtypeStruct((rows, hidden), out_dtype),
        grid_spec=pltpu.PrefetchScalarGridSpec(
            num_scalar_prefetch=0,
            grid=grid,
            in_specs=[
                pl.BlockSpec((row_tile, hidden), lambda i: (i, 0)),   # x row tile (streamed)
                pl.BlockSpec((hidden, a_pad), lambda i: (0, 0)),      # W1 (resident)
                pl.BlockSpec((1, a_pad), lambda i: (0, 0)),           # b1
                pl.BlockSpec((1, a_pad), lambda i: (0, 0)),           # gfc1
                pl.BlockSpec((a_pad, hidden), lambda i: (0, 0)),      # W2 (resident)
                pl.BlockSpec((1, hidden), lambda i: (0, 0)),          # b2
                pl.BlockSpec((1, hidden), lambda i: (0, 0)),          # gfc2
            ],
            out_specs=pl.BlockSpec((row_tile, hidden), lambda i: (i, 0)),
        ),
        compiler_params=pltpu.CompilerParams(
            dimension_semantics=("parallel",),
            vmem_limit_bytes=vmem_limit),
        cost_estimate=cost,
        input_output_aliases=io_aliases,
    )(x2, w1p, b1p, g1p, w2p, b2p, g2p)
    return out.reshape(orig_shape)


def adapter_mask_gates(efc1_w, efc2_w, t, s, smax):
    """RobertaAdapterMask.mask(): sigmoid(s * Embedding(t)); hard-threshold at s == smax."""
    g1 = jax.nn.sigmoid(s * efc1_w[t])
    g2 = jax.nn.sigmoid(s * efc2_w[t])
    if s == smax:
        g1 = (g1 > 0.5).astype(jnp.float32)
        g2 = (g2 > 0.5).astype(jnp.float32)
    return g1, g2


def _reference(x, w1, b1, w2, b2, gfc1=None, gfc2=None, *,
               add_residual=True, matmul_dtype=jnp.bfloat16):
    """Pure-JAX reference mirroring the kernel's dtype handling exactly."""
    hidden = x.shape[-1]
    adapter = w1.shape[1]
    out_dtype = x.dtype
    mdt = jnp.dtype(matmul_dtype)
    x2 = x.reshape(-1, hidden)
    b1f = jnp.asarray(b1, jnp.float32).reshape(1, adapter)
    b2f = jnp.asarray(b2, jnp.float32).reshape(1, hidden)
    g1 = (jnp.ones((1, adapter), jnp.float32) if gfc1 is None
          else jnp.asarray(gfc1, jnp.float32).reshape(1, adapter))
    g2 = (jnp.ones((1, hidden), jnp.float32) if gfc2 is None
          else jnp.asarray(gfc2, jnp.float32).reshape(1, hidden))
    h = jnp.dot(x2.astype(mdt), w1.astype(mdt), preferred_element_type=jnp.float32)
    h = jnp.maximum(h + b1f, 0.0) * g1
    y = jnp.dot(h.astype(mdt), w2.astype(mdt), preferred_element_type=jnp.float32)
    y = jnp.maximum(y + b2f, 0.0) * g2
    if add_residual:
        y = y + x2.astype(jnp.float32)
    return y.astype(out_dtype).reshape(x.shape)


if __name__ == "__main__":
    # Small config consistent with the module: hidden_size=32, adapter_size=16, ntasks=3.
    batch, seq, hidden, adapter, ntasks, smax = 2, 8, 32, 16, 3, 400

    key = jax.random.PRNGKey(0)
    kx, kw1, kb1, kw2, kb2, ke1, ke2, kx2 = jax.random.split(key, 8)

    x = jax.random.normal(kx, (batch, seq, hidden), dtype=jnp.float32)
    w1 = jax.random.uniform(kw1, (hidden, adapter), dtype=jnp.float32,
                            minval=-1.0, maxval=1.0) / jnp.sqrt(hidden)
    b1 = jax.random.uniform(kb1, (adapter,), dtype=jnp.float32,
                            minval=-1.0, maxval=1.0) / jnp.sqrt(hidden)
    w2 = jax.random.uniform(kw2, (adapter, hidden), dtype=jnp.float32,
                            minval=-1.0, maxval=1.0) / jnp.sqrt(adapter)
    b2 = jax.random.uniform(kb2, (hidden,), dtype=jnp.float32,
                            minval=-1.0, maxval=1.0) / jnp.sqrt(adapter)
    efc1_w = jax.random.normal(ke1, (ntasks, adapter), dtype=jnp.float32)
    efc2_w = jax.random.normal(ke2, (ntasks, hidden), dtype=jnp.float32)

    # 1) Plain RobertaAdapter, exact f32 matmul operands: x + relu(fc2(relu(fc1(x)))).
    out = jax.block_until_ready(
        roberta_adapter(x, w1, b1, w2, b2, matmul_dtype=jnp.float32))
    ref = _reference(x, w1, b1, w2, b2, matmul_dtype=jnp.float32)
    assert out.shape == x.shape and out.dtype == x.dtype
    assert jnp.allclose(out, ref, atol=1e-4, rtol=1e-4)

    # 2) RobertaAdapterMask as used by the parallel adapter in RobertaAdaptedSelfAttention
    #    (gated, add_residual=False), default bf16 matmul operands / f32 accumulation.
    t, s = 1, 50.0
    g1, g2 = adapter_mask_gates(efc1_w, efc2_w, t, s, smax)
    out_m = jax.block_until_ready(
        roberta_adapter(x, w1, b1, w2, b2, g1, g2, add_residual=False))
    ref_m = _reference(x, w1, b1, w2, b2, g1, g2, add_residual=False)
    assert jnp.allclose(out_m, ref_m, atol=2e-2, rtol=2e-2)

    # 3) Gated with residual, default bf16 matmul path (residual added against original f32 x).
    out_r = jax.block_until_ready(roberta_adapter(x, w1, b1, w2, b2, g1, g2))
    ref_r = _reference(x, w1, b1, w2, b2, g1, g2)
    assert jnp.allclose(out_r, ref_r, atol=2e-2, rtol=2e-2)

    # 4) Multi-step row grid with a masked (ragged) last tile: rows=14, row_tile=8 -> grid=(2,).
    x_odd = jax.random.normal(kx2, (batch, 7, hidden), dtype=jnp.float32)
    out_o = jax.block_until_ready(
        roberta_adapter(x_odd, w1, b1, w2, b2, row_tile=8, matmul_dtype=jnp.float32))
    ref_o = _reference(x_odd, w1, b1, w2, b2, matmul_dtype=jnp.float32)
    assert jnp.allclose(out_o, ref_o, atol=1e-4, rtol=1e-4)

    print("KERNEL_OK")
</pallas_src>

<mosaic_0001>
module attributes {stable_mosaic.version = 11 : i64} {
  func.func @_adapter_kernel(%arg0: i32, %arg1: memref<16x32xf32, #tpu.memory_space<vmem>>, %arg2: memref<32x128xf32, #tpu.memory_space<vmem>>, %arg3: memref<1x128xf32, #tpu.memory_space<vmem>>, %arg4: memref<1x128xf32, #tpu.memory_space<vmem>>, %arg5: memref<128x32xf32, #tpu.memory_space<vmem>>, %arg6: memref<1x32xf32, #tpu.memory_space<vmem>>, %arg7: memref<1x32xf32, #tpu.memory_space<vmem>>, %arg8: memref<16x32xf32, #tpu.memory_space<vmem>>) attributes {dimension_semantics = [#tpu.dimension_semantics<parallel>], iteration_bounds = array<i64: 1>, scalar_prefetch = 0 : i64, scratch_operands = 0 : i64, tpu.core_type = #tpu.core_type<tc>, window_params = [{transform_indices = @transform_0, window_bounds = array<i64: 16, 32>}, {pipeline_mode = #tpu.pipeline_mode<synchronous>, transform_indices = @transform_1, window_bounds = array<i64: 32, 128>}, {pipeline_mode = #tpu.pipeline_mode<synchronous>, transform_indices = @transform_2, window_bounds = array<i64: 1, 128>}, {pipeline_mode = #tpu.pipeline_mode<synchronous>, transform_indices = @transform_3, window_bounds = array<i64: 1, 128>}, {pipeline_mode = #tpu.pipeline_mode<synchronous>, transform_indices = @transform_4, window_bounds = array<i64: 128, 32>}, {pipeline_mode = #tpu.pipeline_mode<synchronous>, transform_indices = @transform_5, window_bounds = array<i64: 1, 32>}, {pipeline_mode = #tpu.pipeline_mode<synchronous>, transform_indices = @transform_6, window_bounds = array<i64: 1, 32>}, {transform_indices = @transform_7, window_bounds = array<i64: 16, 32>}]} {
    %c0 = arith.constant 0 : index
    %c0_0 = arith.constant 0 : index
    %0 = vector.load %arg1[%c0, %c0_0] : memref<16x32xf32, #tpu.memory_space<vmem>>, vector<16x32xf32>
    %c0_1 = arith.constant 0 : index
    %c0_2 = arith.constant 0 : index
    %1 = vector.load %arg2[%c0_1, %c0_2] : memref<32x128xf32, #tpu.memory_space<vmem>>, vector<32x128xf32>
    %cst = arith.constant dense<0.000000e+00> : vector<16x128xf32>
    %2 = tpu.matmul %0, %1, %cst {dimension_numbers = #tpu.dot_dimension_numbers<[1], [0], [0], [1], [0, 0, 1, 1], [], []>} : vector<16x32xf32>, vector<32x128xf32>, vector<16x128xf32> -> vector<16x128xf32>
    %c0_3 = arith.constant 0 : index
    %c0_4 = arith.constant 0 : index
    %3 = vector.load %arg3[%c0_3, %c0_4] : memref<1x128xf32, #tpu.memory_space<vmem>>, vector<1x128xf32>
    %4 = vector.broadcast %3 : vector<1x128xf32> to vector<16x128xf32>
    %5 = arith.addf %2, %4 : vector<16x128xf32>
    %cst_5 = arith.constant 0.000000e+00 : f32
    %6 = vector.broadcast %cst_5 : f32 to vector<16x128xf32>
    %7 = arith.maximumf %5, %6 : vector<16x128xf32>
    %c0_6 = arith.constant 0 : index
    %c0_7 = arith.constant 0 : index
    %8 = vector.load %arg4[%c0_6, %c0_7] : memref<1x128xf32, #tpu.memory_space<vmem>>, vector<1x128xf32>
    %9 = vector.broadcast %8 : vector<1x128xf32> to vector<16x128xf32>
    %10 = arith.mulf %7, %9 : vector<16x128xf32>
    %c0_8 = arith.constant 0 : index
    %c0_9 = arith.constant 0 : index
    %11 = vector.load %arg5[%c0_8, %c0_9] : memref<128x32xf32, #tpu.memory_space<vmem>>, vector<128x32xf32>
    %cst_10 = arith.constant dense<0.000000e+00> : vector<16x32xf32>
    %12 = tpu.matmul %10, %11, %cst_10 {dimension_numbers = #tpu.dot_dimension_numbers<[1], [0], [0], [1], [0, 0, 1, 1], [], []>} : vector<16x128xf32>, vector<128x32xf32>, vector<16x32xf32> -> vector<16x32xf32>
    %c0_11 = arith.constant 0 : index
    %c0_12 = arith.constant 0 : index
    %13 = vector.load %arg6[%c0_11, %c0_12] : memref<1x32xf32, #tpu.memory_space<vmem>>, vector<1x32xf32>
    %14 = vector.broadcast %13 : vector<1x32xf32> to vector<16x32xf32>
    %15 = arith.addf %12, %14 : vector<16x32xf32>
    %cst_13 = arith.constant 0.000000e+00 : f32
    %16 = vector.broadcast %cst_13 : f32 to vector<16x32xf32>
    %17 = arith.maximumf %15, %16 : vector<16x32xf32>
    %c0_14 = arith.constant 0 : index
    %c0_15 = arith.constant 0 : index
    %18 = vector.load %arg7[%c0_14, %c0_15] : memref<1x32xf32, #tpu.memory_space<vmem>>, vector<1x32xf32>
    %19 = vector.broadcast %18 : vector<1x32xf32> to vector<16x32xf32>
    %20 = arith.mulf %17, %19 : vector<16x32xf32>
    %21 = arith.addf %20, %0 : vector<16x32xf32>
    %c0_16 = arith.constant 0 : index
    %c0_17 = arith.constant 0 : index
    %22 = vector.load %arg8[%c0_16, %c0_17] : memref<16x32xf32, #tpu.memory_space<vmem>>, vector<16x32xf32>
    tpu.vector_store %arg8[%c0_16, %c0_17], %21 {strides = array<i32>} : memref<16x32xf32, #tpu.memory_space<vmem>>, vector<16x32xf32>,
    return
  }
  func.func @transform_0(%arg0: i32) -> (i32, i32) {
    %c0_i32 = arith.constant 0 : i32
    %c0_i32_0 = arith.constant 0 : i32
    return %arg0, %c0_i32 : i32, i32
  }
  func.func @transform_1(%arg0: i32) -> (i32, i32) {
    %c0_i32 = arith.constant 0 : i32
    %c0_i32_0 = arith.constant 0 : i32
    %c0_i32_1 = arith.constant 0 : i32
    return %c0_i32, %c0_i32_0 : i32, i32
  }
  func.func @transform_2(%arg0: i32) -> (i32, i32) {
    %c0_i32 = arith.constant 0 : i32
    %c0_i32_0 = arith.constant 0 : i32
    %c0_i32_1 = arith.constant 0 : i32
    return %c0_i32, %c0_i32_0 : i32, i32
  }
  func.func @transform_3(%arg0: i32) -> (i32, i32) {
    %c0_i32 = arith.constant 0 : i32
    %c0_i32_0 = arith.constant 0 : i32
    %c0_i32_1 = arith.constant 0 : i32
    return %c0_i32, %c0_i32_0 : i32, i32
  }
  func.func @transform_4(%arg0: i32) -> (i32, i32) {
    %c0_i32 = arith.constant 0 : i32
    %c0_i32_0 = arith.constant 0 : i32
    %c0_i32_1 = arith.constant 0 : i32
    return %c0_i32, %c0_i32_0 : i32, i32
  }
  func.func @transform_5(%arg0: i32) -> (i32, i32) {
    %c0_i32 = arith.constant 0 : i32
    %c0_i32_0 = arith.constant 0 : i32
    %c0_i32_1 = arith.constant 0 : i32
    return %c0_i32, %c0_i32_0 : i32, i32
  }
  func.func @transform_6(%arg0: i32) -> (i32, i32) {
    %c0_i32 = arith.constant 0 : i32
    %c0_i32_0 = arith.constant 0 : i32
    %c0_i32_1 = arith.constant 0 : i32
    return %c0_i32, %c0_i32_0 : i32, i32
  }
  func.func @transform_7(%arg0: i32) -> (i32, i32) {
    %c0_i32 = arith.constant 0 : i32
    %c0_i32_0 = arith.constant 0 : i32
    return %arg0, %c0_i32 : i32, i32
  }
}

</mosaic_0001>

<llo_original>
// kernel: tpu_custom_call.1
$region0: #{tpu_custom_call.1}
  #allocation0 [shape = 'u32[]', space=smem, size = 0x4, offset = 0x4, fixed_abs, tag = 'smem constant byte address 0x4 - core index']
  #allocation1 [shape = 'u32[144,128]{1,0:T(1,128)}', space=vmem, size = 0x12000, scoped, tag = 'internal scratch']
  %s0 = inlined_call_operand.vmem [shape: f32[16,32], index: 0, kind: input, shape index: {}]
  %s1 = inlined_call_operand.vmem [shape: f32[32,128], index: 1, kind: input, shape index: {}]
  %s2 = inlined_call_operand.vmem [shape: f32[1,128], index: 2, kind: input, shape index: {}]
  %s3 = inlined_call_operand.vmem [shape: f32[1,128], index: 3, kind: input, shape index: {}]
  %s4 = inlined_call_operand.vmem [shape: f32[128,32], index: 4, kind: input, shape index: {}]
  %s5 = inlined_call_operand.vmem [shape: f32[1,32], index: 5, kind: input, shape index: {}]
  %s6 = inlined_call_operand.vmem [shape: f32[1,32], index: 6, kind: input, shape index: {}]
  %s7 = inlined_call_operand.hbm [shape: f32[16,32], index: 7, kind: output, shape index: {}]
  %s8 = sld [smem:[#allocation0]]
  $region38: #{tpu_custom_call.1} parent=0
    _
  %s10 = ssub.s32 1, %s8
  %s11 = scalar_select 0, %s10, %s8
  $region1: #{tpu_custom_call.1} parent=0
    #allocation2 [shape = 'u8[8192]{0}', space=vmem, size = 0x2000, scoped, tag = 'output window, operand 0, single buffered']
    #allocation3 [shape = 's32[1]{0}', space=sflag, size = 0x4, scoped, tag = 'scoped memory for tpu_custom_call.1']
    %12 = vsyncpa [#allocation3], 0
    // Predicated region
    $region2: #{tpu_custom_call.1} parent=1 // pred_check
      _
    $region3: #{tpu_custom_call.1} parent=1 // pred_check_branch
      %14 = sbr.rel (0) target = $region5
    $region4: #{tpu_custom_call.1} parent=1 // pred_region
      _
    $region5: #{tpu_custom_call.1} parent=1 // pred_fallthru
      _
    // Predicated region
    $region6: #{tpu_custom_call.1} parent=1 // pred_check
      _
    $region7: #{tpu_custom_call.1} parent=1 // pred_check_branch
      %16 = sbr.rel (0) target = $region9
    $region8: #{tpu_custom_call.1} parent=1 // pred_region
      _
    $region9: #{tpu_custom_call.1} parent=1 // pred_fallthru
      _
    // Predicated region
    $region10: #{tpu_custom_call.1} parent=1 // pred_check
      _
    $region11: #{tpu_custom_call.1} parent=1 // pred_check_branch
      %18 = sbr.rel (0) target = $region13
    $region12: #{tpu_custom_call.1} parent=1 // pred_region
      _
    $region13: #{tpu_custom_call.1} parent=1 // pred_fallthru
      _
    // Predicated region
    $region14: #{tpu_custom_call.1} parent=1 // pred_check
      _
    $region15: #{tpu_custom_call.1} parent=1 // pred_check_branch
      %20 = sbr.rel (0) target = $region17
    $region16: #{tpu_custom_call.1} parent=1 // pred_region
      _
    $region17: #{tpu_custom_call.1} parent=1 // pred_fallthru
      _
    // Predicated region
    $region18: #{tpu_custom_call.1} parent=1 // pred_check
      _
    $region19: #{tpu_custom_call.1} parent=1 // pred_check_branch
      %22 = sbr.rel (0) target = $region21
    $region20: #{tpu_custom_call.1} parent=1 // pred_region
      _
    $region21: #{tpu_custom_call.1} parent=1 // pred_fallthru
      _
    // Predicated region
    $region22: #{tpu_custom_call.1} parent=1 // pred_check
      _
    $region23: #{tpu_custom_call.1} parent=1 // pred_check_branch
      %24 = sbr.rel (0) target = $region25
    $region24: #{tpu_custom_call.1} parent=1 // pred_region
      _
    $region25: #{tpu_custom_call.1} parent=1 // pred_fallthru
      _
    // Predicated region
    $region26: #{tpu_custom_call.1} parent=1 // pred_check
      _
    $region27: #{tpu_custom_call.1} parent=1 // pred_check_branch
      %26 = sbr.rel (0) target = $region29
    $region28: #{tpu_custom_call.1} parent=1 // pred_region
      _
    $region29: #{tpu_custom_call.1} parent=1 // pred_fallthru
      _
    %v27 = vld [vmem:[%s0] sm:$0xff]
    %v28 = vld [vmem:[%s0 + $0x8] sm:$0xff]
    %v29 = vld [vmem:[%s1] sm:$0xff]
    %v30 = vld [vmem:[%s1 + $0x8] sm:$0xff]
    %v31 = vld [vmem:[%s1 + $0x10] sm:$0xff]
    %v32 = vld [vmem:[%s1 + $0x18] sm:$0xff]
    %v33 = vld [vmem:[%s2] sm:$0x1]
    %v35 = vlaneseq
    %v36 = vshrl.u32 %v35, 7
    %v37 = vsub.s32 0, %v36
    %v38 = vrot.slane %v33, %v37
    %vm40 = vcmask 261120
    %v42 = vsel %vm40, %v27, 0
    %v45 = vsel %vm40, %v28, 0
    %47 = vmatprep.subr.mxu0 0.0
    %48 = vmatpush1.msra.mxu0 %v29
    %49 = vmatprep.subr.mxu0 0.0
    %50 = vmatpush1.msra.mxu0 %v30
    %51 = vmatprep.subr.mxu0 0.0
    %52 = vmatpush1.msra.mxu0 %v31
    %53 = vmatprep.subr.mxu0 0.0
    %54 = vmatpush1.msra.mxu0 %v32
    %55 = vmatprep.subr.mxu0 0.0
    %56 = vmatpush1.msra.mxu0 0.0
    %57 = vmatprep.subr.mxu0 0.0
    %58 = vmatpush1.msra.mxu0 0.0
    %59 = vmatprep.subr.mxu0 0.0
    %60 = vmatpush1.msra.mxu0 0.0
    %61 = vmatprep.subr.mxu0 0.0
    %62 = vmatpush1.msra.mxu0 0.0
    %63 = vmatprep.subr.mxu0 0.0
    %64 = vmatpush1.msra.mxu0 0.0
    %65 = vmatprep.subr.mxu0 0.0
    %66 = vmatpush1.msra.mxu0 0.0
    %67 = vmatprep.subr.mxu0 0.0
    %68 = vmatpush1.msra.mxu0 0.0
    %69 = vmatprep.subr.mxu0 0.0
    %70 = vmatpush1.msra.mxu0 0.0
    %71 = vmatprep.subr.mxu0 0.0
    %72 = vmatpush1.msra.mxu0 0.0
    %73 = vmatprep.subr.mxu0 0.0
    %74 = vmatpush1.msra.mxu0 0.0
    %75 = vmatprep.subr.mxu0 0.0
    %76 = vmatpush1.msra.mxu0 0.0
    %77 = vmatprep.subr.mxu0 0.0
    %78 = vmatpush1.msra.mxu0 0.0
    %79 = vmatprep.subr.mxu0 0.0
    %80 = vmatpush1.msra.mxu0 0.0
    %81 = vmatprep.subr.mxu0 0.0
    %82 = vmatpush1.msra.mxu0 0.0
    %83 = vmatprep.subr.mxu0 0.0
    %84 = vmatpush1.msra.mxu0 0.0
    %85 = vmatprep.subr.mxu0 0.0
    %86 = vmatpush1.msra.mxu0 0.0
    %87 = vmatprep.subr.mxu0 0.0
    %88 = vmatpush1.msra.mxu0 0.0
    %89 = vmatprep.subr.mxu0 0.0
    %90 = vmatpush1.msra.mxu0 0.0
    %91 = vmatprep.subr.mxu0 0.0
    %92 = vmatpush1.msra.mxu0 0.0
    %93 = vmatprep.subr.mxu0 0.0
    %94 = vmatpush1.msra.mxu0 0.0
    %95 = vmatprep.subr.mxu0 0.0
    %96 = vmatpush1.msra.mxu0 0.0
    %97 = vmatprep.subr.mxu0 0.0
    %98 = vmatpush1.msra.mxu0 0.0
    %99 = vmatprep.subr.mxu0 0.0
    %100 = vmatpush1.msra.mxu0 0.0
    %101 = vmatprep.subr.mxu0 0.0
    %102 = vmatpush1.msra.mxu0 0.0
    %103 = vmatprep.subr.mxu0 0.0
    %104 = vmatpush1.msra.mxu0 0.0
    %105 = vmatprep.subr.mxu0 0.0
    %106 = vmatpush1.msra.mxu0 0.0
    %107 = vmatprep.subr.mxu0 0.0
    %108 = vmatpush1.msra.mxu0 0.0
    %109 = vmatprep.subr.mxu0 0.0
    %110 = vmatpush1.msra.mxu0 0.0
    %111 = vmatprep.mubr.f32.mxu0 0.0
    %112 = vmatmul.mubr.f32.gmra.mrb[0].mxu0 %v42
    %v113 = vpop.f32.mrb[0].mxu0
    %v114 = vadd.f32 %v38, %v113
    %v115 = vpop.f32.mrb[0].mxu0
    %116 = vmatprep.mubr.f32.mxu0 0.0
    %117 = vmatmul.mubr.f32.gmra.mrb[0].mxu0 %v45
    %v118 = vpop.f32.mrb[0].mxu0
    %v119 = vadd.f32 %v38, %v118
    %v120 = vpop.f32.mrb[0].mxu0
    %121 = vdwg.mxu0
    %v122 = vmax.f32 %v114, 0.0
    %v123 = vmax.f32 %v119, 0.0
    %v124 = vld [vmem:[%s3] sm:$0x1]
    %v126 = vlaneseq
    %v127 = vshrl.u32 %v126, 7
    %v128 = vsub.s32 0, %v127
    %v129 = vrot.slane %v124, %v128
    %v131 = vmul.f32 %v122, %v129
    %v132 = vmul.f32 %v123, %v129
    %v133 = vld [vmem:[%s4] sm:$0xff]
    %v134 = vld [vmem:[%s4 + $0x8] sm:$0xff]
    %v135 = vld [vmem:[%s4 + $0x10] sm:$0xff]
    %v136 = vld [vmem:[%s4 + $0x18] sm:$0xff]
    %v137 = vld [vmem:[%s4 + $0x20] sm:$0xff]
    %v138 = vld [vmem:[%s4 + $0x28] sm:$0xff]
    %v139 = vld [vmem:[%s4 + $0x30] sm:$0xff]
    %v140 = vld [vmem:[%s4 + $0x38] sm:$0xff]
    %v141 = vld [vmem:[%s4 + $0x40] sm:$0xff]
    %v142 = vld [vmem:[%s4 + $0x48] sm:$0xff]
    %v143 = vld [vmem:[%s4 + $0x50] sm:$0xff]
    %v144 = vld [vmem:[%s4 + $0x58] sm:$0xff]
    %v145 = vld [vmem:[%s4 + $0x60] sm:$0xff]
    %v146 = vld [vmem:[%s4 + $0x68] sm:$0xff]
    %v147 = vld [vmem:[%s4 + $0x70] sm:$0xff]
    %v148 = vld [vmem:[%s4 + $0x78] sm:$0xff]
    %v149 = vld [vmem:[%s5] sm:$0x1]
    %v151 = vlaneseq
    %v152 = vshrl.u32 %v151, 7
    %v153 = vsub.s32 0, %v152
    %v154 = vrot.slane %v149, %v153
    %156 = vmatprep.subr.mxu0 0.0
    %157 = vmatpush1.msra.mxu0 %v133
    %158 = vmatprep.subr.mxu0 0.0
    %159 = vmatpush1.msra.mxu0 %v134
    %160 = vmatprep.subr.mxu0 0.0
    %161 = vmatpush1.msra.mxu0 %v135
    %162 = vmatprep.subr.mxu0 0.0
    %163 = vmatpush1.msra.mxu0 %v136
    %164 = vmatprep.subr.mxu0 0.0
    %165 = vmatpush1.msra.mxu0 %v137
    %166 = vmatprep.subr.mxu0 0.0
    %167 = vmatpush1.msra.mxu0 %v138
    %168 = vmatprep.subr.mxu0 0.0
    %169 = vmatpush1.msra.mxu0 %v139
    %170 = vmatprep.subr.mxu0 0.0
    %171 = vmatpush1.msra.mxu0 %v140
    %172 = vmatprep.subr.mxu0 0.0
    %173 = vmatpush1.msra.mxu0 %v141
    %174 = vmatprep.subr.mxu0 0.0
    %175 = vmatpush1.msra.mxu0 %v142
    %176 = vmatprep.subr.mxu0 0.0
    %177 = vmatpush1.msra.mxu0 %v143
    %178 = vmatprep.subr.mxu0 0.0
    %179 = vmatpush1.msra.mxu0 %v144
    %180 = vmatprep.subr.mxu0 0.0
    %181 = vmatpush1.msra.mxu0 %v145
    %182 = vmatprep.subr.mxu0 0.0
    %183 = vmatpush1.msra.mxu0 %v146
    %184 = vmatprep.subr.mxu0 0.0
    %185 = vmatpush1.msra.mxu0 %v147
    %186 = vmatprep.subr.mxu0 0.0
    %187 = vmatpush1.msra.mxu0 %v148
    %188 = vmatprep.subr.mxu0 0.0
    %189 = vmatpush1.msra.mxu0 0.0
    %190 = vmatprep.subr.mxu0 0.0
    %191 = vmatpush1.msra.mxu0 0.0
    %192 = vmatprep.subr.mxu0 0.0
    %193 = vmatpush1.msra.mxu0 0.0
    %194 = vmatprep.subr.mxu0 0.0
    %195 = vmatpush1.msra.mxu0 0.0
    %196 = vmatprep.subr.mxu0 0.0
    %197 = vmatpush1.msra.mxu0 0.0
    %198 = vmatprep.subr.mxu0 0.0
    %199 = vmatpush1.msra.mxu0 0.0
    %200 = vmatprep.subr.mxu0 0.0
    %201 = vmatpush1.msra.mxu0 0.0
    %202 = vmatprep.subr.mxu0 0.0
    %203 = vmatpush1.msra.mxu0 0.0
    %204 = vmatprep.subr.mxu0 0.0
    %205 = vmatpush1.msra.mxu0 0.0
    %206 = vmatprep.subr.mxu0 0.0
    %207 = vmatpush1.msra.mxu0 0.0
    %208 = vmatprep.subr.mxu0 0.0
    %209 = vmatpush1.msra.mxu0 0.0
    %210 = vmatprep.subr.mxu0 0.0
    %211 = vmatpush1.msra.mxu0 0.0
    %212 = vmatprep.subr.mxu0 0.0
    %213 = vmatpush1.msra.mxu0 0.0
    %214 = vmatprep.subr.mxu0 0.0
    %215 = vmatpush1.msra.mxu0 0.0
    %216 = vmatprep.subr.mxu0 0.0
    %217 = vmatpush1.msra.mxu0 0.0
    %218 = vmatprep.subr.mxu0 0.0
    %219 = vmatpush1.msra.mxu0 0.0
    %220 = vmatprep.mubr.f32.mxu0 0.0
    %221 = vmatmul.mubr.f32.gmra.mrb[0].mxu0 %v131
    %v222 = vpop.f32.mrb[0].mxu0
    %v223 = vadd.f32 %v154, %v222
    %v224 = vpop.f32.mrb[0].mxu0
    %225 = vmatprep.mubr.f32.mxu0 0.0
    %226 = vmatmul.mubr.f32.gmra.mrb[0].mxu0 %v132
    %v227 = vpop.f32.mrb[0].mxu0
    %v228 = vadd.f32 %v154, %v227
    %v229 = vpop.f32.mrb[0].mxu0
    %230 = vdwg.mxu0
    %v231 = vmax.f32 %v223, 0.0
    %v232 = vmax.f32 %v228, 0.0
    %v233 = vld [vmem:[%s6] sm:$0x1]
    %v235 = vlaneseq
    %v236 = vshrl.u32 %v235, 7
    %v237 = vsub.s32 0, %v236
    %v238 = vrot.slane %v233, %v237
    %v240 = vmul.f32 %v231, %v238
    %v241 = vmul.f32 %v232, %v238
    %v242 = vadd.f32 %v240, %v27
    %v243 = vadd.f32 %v241, %v28
    %244 = vst.msk [vmem:[#allocation2] sm:$0xff] %vm40, %v242
    %245 = vst.msk [vmem:[#allocation2 + $0x8] sm:$0xff] %vm40, %v243
    // Predicated region
    $region30: #{tpu_custom_call.1} parent=1 // pred_check
      _
    $region31: #{tpu_custom_call.1} parent=1 // pred_check_branch
      %247 = sbr.rel (0) target = $region33
    $region32: #{tpu_custom_call.1} parent=1 // pred_region
      %s249 = ssub.s32 256, 256
      %250 = vsyncadd [#allocation3], %s249
      %s251 = sshll.u32 [#allocation2], 4
      %s252 = int_to_ptr.vmem [resolvable:$true] %s251
      %257 = dma.vmem_to_hbm [thread:$0]  %s252, 256, %s7, [#allocation3], 128, 128, 8
    $region33: #{tpu_custom_call.1} parent=1 // pred_fallthru
      _
    // Predicated region
    $region34: #{tpu_custom_call.1} parent=1 // pred_check
      _
    $region35: #{tpu_custom_call.1} parent=1 // pred_check_branch
      %259 = sbr.rel (0) target = $region37
    $region36: #{tpu_custom_call.1} parent=1 // pred_region
      %260 = dma.done [#allocation3], 256
    $region37: #{tpu_custom_call.1} parent=1 // pred_fallthru
      _
    %261 = vsyncpa [#allocation3], 1

</llo_original>
